<compile_context>
chip_gen: v7x
topology: tpu7x:2x2x1
jax: 0.10.0
libtpu: 0.0.40
codegen_flags: <defaults>
</compile_context>

<pallas_src>
import numpy as np
import jax
import jax.numpy as jnp
from jax.experimental import pallas as pl
from jax.experimental.pallas import tpu as pltpu

SELU_ALPHA = 1.6732632423543772
SELU_SCALE = 1.0507009873554805
LANE = 128


def _round_up(n, m):
    return (n + m - 1) // m * m


def _selu(x):
    # SELU(x) = scale * ( x               , x > 0
    #                     alpha*(e^x - 1) , x <= 0 )
    # exp only sees the non-positive branch -> no inf/NaN in the discarded lane.
    # Python-float constants are weakly typed, so this stays in x.dtype
    # (bf16 inside the kernel -> EUP/VPU bf16 path on v6e/v7x).
    return SELU_SCALE * jnp.where(
        x > 0, x, SELU_ALPHA * (jnp.exp(jnp.minimum(x, 0.0)) - 1.0))


def actor_kernel(x_ref, w1_ref, b1_ref, w2_ref, b2_ref, w3_ref, b3_ref, o_ref):
    # x arrives unpadded f32; cast to bf16 in-register for the MXU.
    x = x_ref[...].astype(jnp.bfloat16)                              # [TB, IN]

    # Each layer: bf16 matmul with f32 accumulation, f32 bias add, then the
    # element-wise nonlinearity in bf16 (its result feeds the next bf16 matmul
    # anyway, so no precision is lost relative to the original recipe).
    h1 = jnp.dot(x, w1_ref[...], preferred_element_type=jnp.float32) + b1_ref[...]
    h1 = _selu(h1.astype(jnp.bfloat16))                              # [TB, H1P] bf16

    h2 = jnp.dot(h1, w2_ref[...], preferred_element_type=jnp.float32) + b2_ref[...]
    h2 = _selu(h2.astype(jnp.bfloat16))                              # [TB, H2P] bf16

    h3 = jnp.dot(h2, w3_ref[...], preferred_element_type=jnp.float32) + b3_ref[...]
    o_ref[...] = jnp.tanh(h3.astype(jnp.bfloat16)).astype(o_ref.dtype)


def actor_forward(x, p, nb_actions, *, batch_tile=1024):
    """x: [B, nb_status] f32 (unpadded).  p: params from pad_params().
    Returns [B, nb_actions] f32.

    batch_tile=1024 keeps the double-buffered x/out tiles + intermediates a few
    MiB (fits v5e's 16 MiB scoped-VMEM default; raise vmem_limit_bytes if you
    push the tile past ~2K rows or widen the hidden layers)."""
    B, nb_status = x.shape
    h1_pad = p["w1"].shape[1]
    h2_pad = p["w2"].shape[1]
    out_pad = p["w3"].shape[1]

    # Batch tile: multiple of 16 (bf16 sublane packing), fitted to B so ragged
    # waste is < 16 rows per tile, and forced to >= 2 grid steps when B >= 32
    # so v7x's two TensorCores both get work on the "parallel" batch axis.
    n_tiles = max(1, pl.cdiv(B, batch_tile))
    if n_tiles == 1 and B >= 32:
        n_tiles = 2
    tb = max(16, _round_up(pl.cdiv(B, n_tiles), 16))
    grid = pl.cdiv(B, tb)

    def resident(shape):
        # Constant block index => DMA'd once, kept VMEM-resident across the grid.
        # (If hidden widths ever grow large, switch these to
        #  pipeline_mode=pl.Buffered(1) so the never-changing weights aren't
        #  double-buffered.)
        return pl.BlockSpec(shape, lambda i: (0, 0))

    out = pl.pallas_call(
        actor_kernel,
        out_shape=jax.ShapeDtypeStruct((B, out_pad), jnp.float32),
        grid=(grid,),
        in_specs=[
            # x: unpadded f32, pipelined per batch tile.  Its last block dim
            # equals the full array dim, so the 128-lane rule doesn't apply.
            pl.BlockSpec((tb, nb_status), lambda i: (i, 0)),
            resident((nb_status, h1_pad)), resident((1, h1_pad)),
            resident((h1_pad, h2_pad)),   resident((1, h2_pad)),
            resident((h2_pad, out_pad)),  resident((1, out_pad)),
        ],
        out_specs=pl.BlockSpec((tb, out_pad), lambda i: (i, 0)),
        compiler_params=pltpu.CompilerParams(
            dimension_semantics=("parallel",)),
    )(x, p["w1"], p["b1"], p["w2"], p["b2"], p["w3"], p["b3"])

    return out[:, :nb_actions]


def init_actor_params(key, nb_status, nb_actions, hidden1=400, hidden2=300,
                      init_w=0.003):
    """Deterministic init mirroring the PyTorch module:
       fc1/fc2 weights ~ fanin_init (U[-1/sqrt(fanin), 1/sqrt(fanin)]),
       fc3 weight ~ U[-init_w, init_w],
       biases use PyTorch Linear default U[-1/sqrt(fanin), 1/sqrt(fanin)].
       Stored as [in, out] (transpose of nn.Linear.weight)."""
    ks = jax.random.split(key, 6)

    def uniform(k, shape, bound):
        return jax.random.uniform(k, shape, jnp.float32, -bound, bound)

    v1 = 1.0 / np.sqrt(nb_status)
    v2 = 1.0 / np.sqrt(hidden1)
    v3 = 1.0 / np.sqrt(hidden2)
    return {
        "w1": uniform(ks[0], (nb_status, hidden1), v1),
        "b1": uniform(ks[1], (1, hidden1), v1),
        "w2": uniform(ks[2], (hidden1, hidden2), v2),
        "b2": uniform(ks[3], (1, hidden2), v2),
        "w3": uniform(ks[4], (hidden2, nb_actions), init_w),
        "b3": uniform(ks[5], (1, nb_actions), v3),
    }


def pad_params(p):
    """Zero-pad hidden/output widths to 128 lanes and cast weight matrices to
    bf16 (biases stay f32).  w1's K dim (nb_status) stays UNPADDED — the kernel
    reads x unpadded, so layer 1 does no zero-K work.  Padded rows/cols are
    zero, so the forward pass is mathematically unchanged."""
    def pad2(a, r, c, dtype):
        out = jnp.zeros((r, c), dtype)
        return out.at[:a.shape[0], :a.shape[1]].set(a.astype(dtype))

    nb_status, h1 = p["w1"].shape
    _, h2 = p["w2"].shape
    _, na = p["w3"].shape
    h1_p = _round_up(h1, LANE)
    h2_p = _round_up(h2, LANE)
    out_p = _round_up(na, LANE)
    return {
        "w1": pad2(p["w1"], nb_status, h1_p, jnp.bfloat16),   # K unpadded
        "b1": pad2(p["b1"], 1, h1_p, jnp.float32),
        "w2": pad2(p["w2"], h1_p, h2_p, jnp.bfloat16),
        "b2": pad2(p["b2"], 1, h2_p, jnp.float32),
        "w3": pad2(p["w3"], h2_p, out_p, jnp.bfloat16),
        "b3": pad2(p["b3"], 1, out_p, jnp.float32),
    }


def actor_reference_f32(x, p):
    """Full-precision pure-JAX reference on the unpadded f32 params
    (== the PyTorch forward with use_bn=False)."""
    h1 = jax.nn.selu(x @ p["w1"] + p["b1"])
    h2 = jax.nn.selu(h1 @ p["w2"] + p["b2"])
    return jnp.tanh(h2 @ p["w3"] + p["b3"])


def actor_reference_kernel_recipe(x, pp, nb_actions):
    """Pure-JAX reference using the same numerical recipe as the kernel:
    bf16 matmul inputs, f32 accumulation + bias add, bf16 SELU/tanh."""
    xb = x.astype(jnp.bfloat16)
    h1 = _selu((jnp.dot(xb, pp["w1"], preferred_element_type=jnp.float32)
                + pp["b1"]).astype(jnp.bfloat16))
    h2 = _selu((jnp.dot(h1, pp["w2"], preferred_element_type=jnp.float32)
                + pp["b2"]).astype(jnp.bfloat16))
    h3 = (jnp.dot(h2, pp["w3"], preferred_element_type=jnp.float32)
          + pp["b3"]).astype(jnp.bfloat16)
    return jnp.tanh(h3).astype(jnp.float32)[:, :nb_actions]


if __name__ == "__main__":
    # Small shapes consistent with the module's forward:
    # batch=64, nb_status=32, hidden1=64, hidden2=48, nb_actions=8
    B, NB_STATUS, H1, H2, NB_ACTIONS = 64, 32, 64, 48, 8

    key = jax.random.PRNGKey(0)
    k_x, k_p = jax.random.split(key)
    x = jax.random.normal(k_x, (B, NB_STATUS), jnp.float32)
    params = init_actor_params(k_p, NB_STATUS, NB_ACTIONS, hidden1=H1, hidden2=H2)
    pparams = pad_params(params)

    out = jax.block_until_ready(actor_forward(x, pparams, NB_ACTIONS))
    assert out.shape == (B, NB_ACTIONS)

    # Check against a pure-JAX version of the same bf16/f32 recipe
    # (small slack for EUP-vs-XLA bf16 exp/tanh ulp differences).
    ref_recipe = actor_reference_kernel_recipe(x, pparams, NB_ACTIONS)
    np.testing.assert_allclose(np.asarray(out), np.asarray(ref_recipe),
                               atol=5e-3, rtol=1e-2)

    # Sanity check against the full-f32 reference (bf16 quantization noise only;
    # tanh outputs here have magnitude ~0.1).
    ref_f32 = actor_reference_f32(x, params)
    np.testing.assert_allclose(np.asarray(out), np.asarray(ref_f32),
                               atol=2e-2, rtol=0)

    # TODO(synk): bn1/bn2 (BatchNorm1d, affine=False) are only used when
    # use_bn=True; the default use_bn=False path is implemented here.
    print("KERNEL_OK")
</pallas_src>

<mosaic_0001>
module attributes {stable_mosaic.version = 11 : i64} {
  func.func @actor_kernel(%arg0: i32, %arg1: memref<32x32xf32, #tpu.memory_space<vmem>>, %arg2: memref<32x128xbf16, #tpu.memory_space<vmem>>, %arg3: memref<1x128xf32, #tpu.memory_space<vmem>>, %arg4: memref<128x128xbf16, #tpu.memory_space<vmem>>, %arg5: memref<1x128xf32, #tpu.memory_space<vmem>>, %arg6: memref<128x128xbf16, #tpu.memory_space<vmem>>, %arg7: memref<1x128xf32, #tpu.memory_space<vmem>>, %arg8: memref<32x128xf32, #tpu.memory_space<vmem>>) attributes {dimension_semantics = [#tpu.dimension_semantics<parallel>], iteration_bounds = array<i64: 2>, scalar_prefetch = 0 : i64, scratch_operands = 0 : i64, tpu.core_type = #tpu.core_type<tc>, window_params = [{transform_indices = @transform_0, window_bounds = array<i64: 32, 32>}, {pipeline_mode = #tpu.pipeline_mode<synchronous>, transform_indices = @transform_1, window_bounds = array<i64: 32, 128>}, {pipeline_mode = #tpu.pipeline_mode<synchronous>, transform_indices = @transform_2, window_bounds = array<i64: 1, 128>}, {pipeline_mode = #tpu.pipeline_mode<synchronous>, transform_indices = @transform_3, window_bounds = array<i64: 128, 128>}, {pipeline_mode = #tpu.pipeline_mode<synchronous>, transform_indices = @transform_4, window_bounds = array<i64: 1, 128>}, {pipeline_mode = #tpu.pipeline_mode<synchronous>, transform_indices = @transform_5, window_bounds = array<i64: 128, 128>}, {pipeline_mode = #tpu.pipeline_mode<synchronous>, transform_indices = @transform_6, window_bounds = array<i64: 1, 128>}, {transform_indices = @transform_7, window_bounds = array<i64: 32, 128>}]} {
    %c0 = arith.constant 0 : index
    %c0_0 = arith.constant 0 : index
    %0 = vector.load %arg1[%c0, %c0_0] : memref<32x32xf32, #tpu.memory_space<vmem>>, vector<32x32xf32>
    %1 = arith.truncf %0 : vector<32x32xf32> to vector<32x32xbf16>
    %c0_1 = arith.constant 0 : index
    %c0_2 = arith.constant 0 : index
    %2 = vector.load %arg2[%c0_1, %c0_2] : memref<32x128xbf16, #tpu.memory_space<vmem>>, vector<32x128xbf16>
    %cst = arith.constant dense<0.000000e+00> : vector<32x128xf32>
    %3 = tpu.matmul %1, %2, %cst {dimension_numbers = #tpu.dot_dimension_numbers<[1], [0], [0], [1], [0, 0, 1, 1], [], []>} : vector<32x32xbf16>, vector<32x128xbf16>, vector<32x128xf32> -> vector<32x128xf32>
    %c0_3 = arith.constant 0 : index
    %c0_4 = arith.constant 0 : index
    %4 = vector.load %arg3[%c0_3, %c0_4] : memref<1x128xf32, #tpu.memory_space<vmem>>, vector<1x128xf32>
    %5 = vector.broadcast %4 : vector<1x128xf32> to vector<32x128xf32>
    %6 = arith.addf %3, %5 : vector<32x128xf32>
    %7 = arith.truncf %6 : vector<32x128xf32> to vector<32x128xbf16>
    %cst_5 = arith.constant 0.000000e+00 : bf16
    %8 = vector.broadcast %cst_5 : bf16 to vector<32x128xbf16>
    %9 = arith.cmpf ogt, %7, %8 : vector<32x128xbf16>
    %cst_6 = arith.constant 0.000000e+00 : bf16
    %10 = vector.broadcast %cst_6 : bf16 to vector<32x128xbf16>
    %11 = arith.minimumf %7, %10 : vector<32x128xbf16>
    %12 = math.exp %11 : vector<32x128xbf16>
    %cst_7 = arith.constant 1.000000e+00 : bf16
    %13 = vector.broadcast %cst_7 : bf16 to vector<32x128xbf16>
    %14 = arith.subf %12, %13 : vector<32x128xbf16>
    %cst_8 = arith.constant 1.671880e+00 : bf16
    %15 = vector.broadcast %cst_8 : bf16 to vector<32x128xbf16>
    %16 = arith.mulf %15, %14 : vector<32x128xbf16>
    %17 = arith.select %9, %7, %16 : vector<32x128xi1>, vector<32x128xbf16>
    %cst_9 = arith.constant 1.046880e+00 : bf16
    %18 = vector.broadcast %cst_9 : bf16 to vector<32x128xbf16>
    %19 = arith.mulf %18, %17 : vector<32x128xbf16>
    %c0_10 = arith.constant 0 : index
    %c0_11 = arith.constant 0 : index
    %20 = vector.load %arg4[%c0_10, %c0_11] : memref<128x128xbf16, #tpu.memory_space<vmem>>, vector<128x128xbf16>
    %cst_12 = arith.constant dense<0.000000e+00> : vector<32x128xf32>
    %21 = tpu.matmul %19, %20, %cst_12 {dimension_numbers = #tpu.dot_dimension_numbers<[1], [0], [0], [1], [0, 0, 1, 1], [], []>} : vector<32x128xbf16>, vector<128x128xbf16>, vector<32x128xf32> -> vector<32x128xf32>
    %c0_13 = arith.constant 0 : index
    %c0_14 = arith.constant 0 : index
    %22 = vector.load %arg5[%c0_13, %c0_14] : memref<1x128xf32, #tpu.memory_space<vmem>>, vector<1x128xf32>
    %23 = vector.broadcast %22 : vector<1x128xf32> to vector<32x128xf32>
    %24 = arith.addf %21, %23 : vector<32x128xf32>
    %25 = arith.truncf %24 : vector<32x128xf32> to vector<32x128xbf16>
    %cst_15 = arith.constant 0.000000e+00 : bf16
    %26 = vector.broadcast %cst_15 : bf16 to vector<32x128xbf16>
    %27 = arith.cmpf ogt, %25, %26 : vector<32x128xbf16>
    %cst_16 = arith.constant 0.000000e+00 : bf16
    %28 = vector.broadcast %cst_16 : bf16 to vector<32x128xbf16>
    %29 = arith.minimumf %25, %28 : vector<32x128xbf16>
    %30 = math.exp %29 : vector<32x128xbf16>
    %cst_17 = arith.constant 1.000000e+00 : bf16
    %31 = vector.broadcast %cst_17 : bf16 to vector<32x128xbf16>
    %32 = arith.subf %30, %31 : vector<32x128xbf16>
    %cst_18 = arith.constant 1.671880e+00 : bf16
    %33 = vector.broadcast %cst_18 : bf16 to vector<32x128xbf16>
    %34 = arith.mulf %33, %32 : vector<32x128xbf16>
    %35 = arith.select %27, %25, %34 : vector<32x128xi1>, vector<32x128xbf16>
    %cst_19 = arith.constant 1.046880e+00 : bf16
    %36 = vector.broadcast %cst_19 : bf16 to vector<32x128xbf16>
    %37 = arith.mulf %36, %35 : vector<32x128xbf16>
    %c0_20 = arith.constant 0 : index
    %c0_21 = arith.constant 0 : index
    %38 = vector.load %arg6[%c0_20, %c0_21] : memref<128x128xbf16, #tpu.memory_space<vmem>>, vector<128x128xbf16>
    %cst_22 = arith.constant dense<0.000000e+00> : vector<32x128xf32>
    %39 = tpu.matmul %37, %38, %cst_22 {dimension_numbers = #tpu.dot_dimension_numbers<[1], [0], [0], [1], [0, 0, 1, 1], [], []>} : vector<32x128xbf16>, vector<128x128xbf16>, vector<32x128xf32> -> vector<32x128xf32>
    %c0_23 = arith.constant 0 : index
    %c0_24 = arith.constant 0 : index
    %40 = vector.load %arg7[%c0_23, %c0_24] : memref<1x128xf32, #tpu.memory_space<vmem>>, vector<1x128xf32>
    %41 = vector.broadcast %40 : vector<1x128xf32> to vector<32x128xf32>
    %42 = arith.addf %39, %41 : vector<32x128xf32>
    %43 = arith.truncf %42 : vector<32x128xf32> to vector<32x128xbf16>
    %44 = math.tanh %43 : vector<32x128xbf16>
    %45 = arith.extf %44 : vector<32x128xbf16> to vector<32x128xf32>
    %c0_25 = arith.constant 0 : index
    %c0_26 = arith.constant 0 : index
    %46 = vector.load %arg8[%c0_25, %c0_26] : memref<32x128xf32, #tpu.memory_space<vmem>>, vector<32x128xf32>
    tpu.vector_store %arg8[%c0_25, %c0_26], %45 {strides = array<i32>} : memref<32x128xf32, #tpu.memory_space<vmem>>, vector<32x128xf32>,
    return
  }
  func.func @transform_0(%arg0: i32) -> (i32, i32) {
    %c0_i32 = arith.constant 0 : i32
    %c0_i32_0 = arith.constant 0 : i32
    return %arg0, %c0_i32 : i32, i32
  }
  func.func @transform_1(%arg0: i32) -> (i32, i32) {
    %c0_i32 = arith.constant 0 : i32
    %c0_i32_0 = arith.constant 0 : i32
    %c0_i32_1 = arith.constant 0 : i32
    return %c0_i32, %c0_i32_0 : i32, i32
  }
  func.func @transform_2(%arg0: i32) -> (i32, i32) {
    %c0_i32 = arith.constant 0 : i32
    %c0_i32_0 = arith.constant 0 : i32
    %c0_i32_1 = arith.constant 0 : i32
    return %c0_i32, %c0_i32_0 : i32, i32
  }
  func.func @transform_3(%arg0: i32) -> (i32, i32) {
    %c0_i32 = arith.constant 0 : i32
    %c0_i32_0 = arith.constant 0 : i32
    %c0_i32_1 = arith.constant 0 : i32
    return %c0_i32, %c0_i32_0 : i32, i32
  }
  func.func @transform_4(%arg0: i32) -> (i32, i32) {
    %c0_i32 = arith.constant 0 : i32
    %c0_i32_0 = arith.constant 0 : i32
    %c0_i32_1 = arith.constant 0 : i32
    return %c0_i32, %c0_i32_0 : i32, i32
  }
  func.func @transform_5(%arg0: i32) -> (i32, i32) {
    %c0_i32 = arith.constant 0 : i32
    %c0_i32_0 = arith.constant 0 : i32
    %c0_i32_1 = arith.constant 0 : i32
    return %c0_i32, %c0_i32_0 : i32, i32
  }
  func.func @transform_6(%arg0: i32) -> (i32, i32) {
    %c0_i32 = arith.constant 0 : i32
    %c0_i32_0 = arith.constant 0 : i32
    %c0_i32_1 = arith.constant 0 : i32
    return %c0_i32, %c0_i32_0 : i32, i32
  }
  func.func @transform_7(%arg0: i32) -> (i32, i32) {
    %c0_i32 = arith.constant 0 : i32
    %c0_i32_0 = arith.constant 0 : i32
    return %arg0, %c0_i32 : i32, i32
  }
}

</mosaic_0001>

<llo_original>
// kernel: tpu_custom_call.1
$region0: #{tpu_custom_call.1}
  #allocation0 [shape = 'u32[]', space=smem, size = 0x4, offset = 0x4, fixed_abs, tag = 'smem constant byte address 0x4 - core index']
  #allocation1 [shape = 'u32[144,128]{1,0:T(1,128)}', space=vmem, size = 0x12000, scoped, tag = 'internal scratch']
  %s0 = inlined_call_operand.vmem [shape: f32[64,32], index: 0, kind: input, shape index: {}]
  %s1 = inlined_call_operand.vmem [shape: bf16[32,128], index: 1, kind: input, shape index: {}]
  %s2 = inlined_call_operand.vmem [shape: f32[1,128], index: 2, kind: input, shape index: {}]
  %s3 = inlined_call_operand.vmem [shape: bf16[128,128], index: 3, kind: input, shape index: {}]
  %s4 = inlined_call_operand.vmem [shape: f32[1,128], index: 4, kind: input, shape index: {}]
  %s5 = inlined_call_operand.hbm [shape: bf16[128,128], index: 5, kind: input, shape index: {}]
  %s6 = inlined_call_operand.vmem [shape: f32[1,128], index: 6, kind: input, shape index: {}]
  %s7 = inlined_call_operand.hbm [shape: f32[64,128], index: 7, kind: output, shape index: {}]
  %s8 = sld [smem:[#allocation0]]
  $region65: #{tpu_custom_call.1} parent=0
    _
  %s10 = ssub.s32 1, %s8
  %s11 = scalar_select 0, %s10, %s8
  $region1: #{tpu_custom_call.1} parent=0
    #allocation2 [shape = 'u8[32768]{0}', space=vmem, size = 0x8000, scoped, tag = 'input window, operand 5, single buffered']
    #allocation3 [shape = 's32[2]{0}', space=sflag, size = 0x8, scoped, tag = 'scoped memory for tpu_custom_call.1']
    #allocation4 [shape = 's32[2]{0}', space=sflag, size = 0x8, scoped, tag = 'scoped memory for tpu_custom_call.1']
    #allocation5 [shape = 'u8[32768]{0}', space=vmem, size = 0x8000, scoped, tag = 'output window, operand 0']
    %12 = vsyncpa [#allocation3], 0
    %13 = vsyncpa [#allocation4], 0
    %s14 = scalar_lea.sflag [#allocation4], 1
    %15 = vsyncpa %s14, 0
    loop: start=0, step=1, limit=4
    $region2: #{tpu_custom_call.1} parent=1 // loop_pre_header
      _
    $region3: #{tpu_custom_call.1} parent=1 // loop_header
      %s17 = sphi 0, %s21
      %p18 = scmp.ge.s32.totalorder %s17, 4
      %s27 = sphi 0, %s29
      %s30 = sphi 0, %s27
      %s31 = sphi 0, %s30
      %s47 = sphi 0, %s31
      %s51 = sphi 0, %s51
      %s53 = sphi 0, %s51
      %s54 = sphi 0, %s53
      %s68 = sphi 0, %s54
      %s72 = sphi 0, %s72
      %s74 = sphi 0, %s72
      %s75 = sphi 0, %s74
      %s89 = sphi 0, %s75
      %s93 = sphi 0, %s93
      %s95 = sphi 0, %s93
      %s96 = sphi 0, %s95
      %s110 = sphi 0, %s96
      %s114 = sphi 0, %s114
      %s116 = sphi 0, %s114
      %s117 = sphi 0, %s116
      %s131 = sphi 0, %s117
      %s135 = sphi 0, %s135
      %s137 = sphi 0, %s135
      %s138 = sphi 0, %s137
      %s152 = sphi 0, %s138
      %s156 = sphi 0, %s156
      %s158 = sphi 0, %s156
      %s159 = sphi 0, %s158
      %s173 = sphi 0, %s159
      %s179 = sphi 0, %s181
      %s182 = sphi 0, %s179
      %s183 = sphi 0, %s182
      %s199 = sphi 0, %s183
    $region4: #{tpu_custom_call.1} parent=1 // loop_header_branch
      %20 = sbr.rel (%p18) target = $region8
    $region5: #{tpu_custom_call.1} parent=1 // loop_body
      %s22 = ssub.s32 %s17, 1
      %s23 = ssub.s32 %s17, 2
      %s24 = sadd.s32 %s17, 1
      %s25 = ssub.s32 %s17, %s24
      %p26 = scmp.eq.s32.totalorder %s25, 0
      %s28 = sadd.s32 %s27, 1
      %s29 = scalar_select %p26, %s27, %s28
      %p32 = pneg %p26
      %p33 = scmp.eq.s32.totalorder %s17, 1
      %p34 = por %p32, %p33
      %p35 = scmp.ne.s32.totalorder %s27, %s30
      %p36 = scmp.eq.s32.totalorder %s17, 0
      %p37 = por %p35, %p36
      %p38 = scmp.ne.s32.totalorder %s27, %s30
      %p39 = scmp.eq.s32.totalorder %s22, 1
      %p40 = por %p38, %p39
      %p41 = scmp.ne.s32.totalorder %s30, %s31
      %p42 = scmp.eq.s32.totalorder %s22, 0
      %p43 = por %p41, %p42
      %p44 = scmp.ne.s32.totalorder %s30, %s31
      %p45 = scmp.eq.s32.totalorder %s23, 1
      %p46 = por %p44, %p45
      %p48 = scmp.ne.s32.totalorder %s31, %s47
      %p49 = scmp.eq.s32.totalorder %s23, 0
      %p50 = por %p48, %p49
      %s52 = sadd.s32 %s51, 1
      %p55 = scmp.eq.s32.totalorder %s17, 1
      %p56 = scmp.ne.s32.totalorder %s51, %s53
      %p57 = scmp.eq.s32.totalorder %s17, 0
      %p58 = por %p56, %p57
      %p59 = scmp.ne.s32.totalorder %s51, %s53
      %p60 = scmp.eq.s32.totalorder %s22, 1
      %p61 = por %p59, %p60
      %p62 = scmp.ne.s32.totalorder %s53, %s54
      %p63 = scmp.eq.s32.totalorder %s22, 0
      %p64 = por %p62, %p63
      %p65 = scmp.ne.s32.totalorder %s53, %s54
      %p66 = scmp.eq.s32.totalorder %s23, 1
      %p67 = por %p65, %p66
      %p69 = scmp.ne.s32.totalorder %s54, %s68
      %p70 = scmp.eq.s32.totalorder %s23, 0
      %p71 = por %p69, %p70
      %s73 = sadd.s32 %s72, 1
      %p76 = scmp.eq.s32.totalorder %s17, 1
      %p77 = scmp.ne.s32.totalorder %s72, %s74
      %p78 = scmp.eq.s32.totalorder %s17, 0
      %p79 = por %p77, %p78
      %p80 = scmp.ne.s32.totalorder %s72, %s74
      %p81 = scmp.eq.s32.totalorder %s22, 1
      %p82 = por %p80, %p81
      %p83 = scmp.ne.s32.totalorder %s74, %s75
      %p84 = scmp.eq.s32.totalorder %s22, 0
      %p85 = por %p83, %p84
      %p86 = scmp.ne.s32.totalorder %s74, %s75
      %p87 = scmp.eq.s32.totalorder %s23, 1
      %p88 = por %p86, %p87
      %p90 = scmp.ne.s32.totalorder %s75, %s89
      %p91 = scmp.eq.s32.totalorder %s23, 0
      %p92 = por %p90, %p91
      %s94 = sadd.s32 %s93, 1
      %p97 = scmp.eq.s32.totalorder %s17, 1
      %p98 = scmp.ne.s32.totalorder %s93, %s95
      %p99 = scmp.eq.s32.totalorder %s17, 0
      %p100 = por %p98, %p99
      %p101 = scmp.ne.s32.totalorder %s93, %s95
      %p102 = scmp.eq.s32.totalorder %s22, 1
      %p103 = por %p101, %p102
      %p104 = scmp.ne.s32.totalorder %s95, %s96
      %p105 = scmp.eq.s32.totalorder %s22, 0
      %p106 = por %p104, %p105
      %p107 = scmp.ne.s32.totalorder %s95, %s96
      %p108 = scmp.eq.s32.totalorder %s23, 1
      %p109 = por %p107, %p108
      %p111 = scmp.ne.s32.totalorder %s96, %s110
      %p112 = scmp.eq.s32.totalorder %s23, 0
      %p113 = por %p111, %p112
      %s115 = sadd.s32 %s114, 1
      %p118 = scmp.eq.s32.totalorder %s17, 1
      %p119 = scmp.ne.s32.totalorder %s114, %s116
      %p120 = scmp.eq.s32.totalorder %s17, 0
      %p121 = por %p119, %p120
      %p122 = scmp.ne.s32.totalorder %s114, %s116
      %p123 = scmp.eq.s32.totalorder %s22, 1
      %p124 = por %p122, %p123
      %p125 = scmp.ne.s32.totalorder %s116, %s117
      %p126 = scmp.eq.s32.totalorder %s22, 0
      %p127 = por %p125, %p126
      %p128 = scmp.ne.s32.totalorder %s116, %s117
      %p129 = scmp.eq.s32.totalorder %s23, 1
      %p130 = por %p128, %p129
      %p132 = scmp.ne.s32.totalorder %s117, %s131
      %p133 = scmp.eq.s32.totalorder %s23, 0
      %p134 = por %p132, %p133
      %s136 = sadd.s32 %s135, 1
      %p139 = scmp.eq.s32.totalorder %s17, 1
      %p140 = scmp.ne.s32.totalorder %s135, %s137
      %p141 = scmp.eq.s32.totalorder %s17, 0
      %p142 = por %p140, %p141
      %p143 = scmp.ne.s32.totalorder %s135, %s137
      %p144 = scmp.eq.s32.totalorder %s22, 1
      %p145 = por %p143, %p144
      %p146 = scmp.ne.s32.totalorder %s137, %s138
      %p147 = scmp.eq.s32.totalorder %s22, 0
      %p148 = por %p146, %p147
      %p149 = scmp.ne.s32.totalorder %s137, %s138
      %p150 = scmp.eq.s32.totalorder %s23, 1
      %p151 = por %p149, %p150
      %p153 = scmp.ne.s32.totalorder %s138, %s152
      %p154 = scmp.eq.s32.totalorder %s23, 0
      %p155 = por %p153, %p154
      %s157 = sadd.s32 %s156, 1
      %p160 = scmp.eq.s32.totalorder %s17, 1
      %p161 = scmp.ne.s32.totalorder %s156, %s158
      %p162 = scmp.eq.s32.totalorder %s17, 0
      %p163 = por %p161, %p162
      %p164 = scmp.ne.s32.totalorder %s156, %s158
      %p165 = scmp.eq.s32.totalorder %s22, 1
      %p166 = por %p164, %p165
      %p167 = scmp.ne.s32.totalorder %s158, %s159
      %p168 = scmp.eq.s32.totalorder %s22, 0
      %p169 = por %p167, %p168
      %p170 = scmp.ne.s32.totalorder %s158, %s159
      %p171 = scmp.eq.s32.totalorder %s23, 1
      %p172 = por %p170, %p171
      %p174 = scmp.ne.s32.totalorder %s159, %s173
      %p175 = scmp.eq.s32.totalorder %s23, 0
      %p176 = por %p174, %p175
      %s177 = ssub.s32 %s17, %s24
      %p178 = scmp.eq.s32.totalorder %s177, 0
      %s180 = sadd.s32 %s179, 1
      %s181 = scalar_select %p178, %s179, %s180
      %p184 = pneg %p178
      %p185 = scmp.eq.s32.totalorder %s17, 1
      %p186 = por %p184, %p185
      %p187 = scmp.ne.s32.totalorder %s179, %s182
      %p188 = scmp.eq.s32.totalorder %s17, 0
      %p189 = por %p187, %p188
      %p190 = scmp.ne.s32.totalorder %s179, %s182
      %p191 = scmp.eq.s32.totalorder %s22, 1
      %p192 = por %p190, %p191
      %p193 = scmp.ne.s32.totalorder %s182, %s183
      %p194 = scmp.eq.s32.totalorder %s22, 0
      %p195 = por %p193, %p194
      %p196 = scmp.ne.s32.totalorder %s182, %s183
      %p197 = scmp.eq.s32.totalorder %s23, 1
      %p198 = por %p196, %p197
      %p200 = scmp.ne.s32.totalorder %s183, %s199
      %p201 = scmp.eq.s32.totalorder %s23, 0
      %p202 = por %p200, %p201
      %p203 = scmp.le.s32.totalorder 1, %s17
      %p204 = scmp.lt.s32.totalorder %s17, 3
      %p205 = pnand %p203, %p204
      %p206 = pneg %p205
      // Predicated region
      $region9: #{tpu_custom_call.1} parent=5 // pred_check
        _
      $region10: #{tpu_custom_call.1} parent=5 // pred_check_branch
        %208 = sbr.rel (%p205) target = $region12
      $region11: #{tpu_custom_call.1} parent=5 // pred_region
        %s209 = ssub.s32 %s17, 1
        // Predicated region
        $region13: #{tpu_custom_call.1} parent=11 // pred_check
          %p210 = pneg %p64
        $region14: #{tpu_custom_call.1} parent=11 // pred_check_branch
          %212 = sbr.rel (%p210) target = $region16
        $region15: #{tpu_custom_call.1} parent=11 // pred_region
          _
        $region16: #{tpu_custom_call.1} parent=11 // pred_fallthru
          _
        // Predicated region
        $region17: #{tpu_custom_call.1} parent=11 // pred_check
          %p213 = pneg %p85
        $region18: #{tpu_custom_call.1} parent=11 // pred_check_branch
          %215 = sbr.rel (%p213) target = $region20
        $region19: #{tpu_custom_call.1} parent=11 // pred_region
          _
        $region20: #{tpu_custom_call.1} parent=11 // pred_fallthru
          _
        // Predicated region
        $region21: #{tpu_custom_call.1} parent=11 // pred_check
          %p216 = pneg %p106
        $region22: #{tpu_custom_call.1} parent=11 // pred_check_branch
          %218 = sbr.rel (%p216) target = $region24
        $region23: #{tpu_custom_call.1} parent=11 // pred_region
          _
        $region24: #{tpu_custom_call.1} parent=11 // pred_fallthru
          _
        // Predicated region
        $region25: #{tpu_custom_call.1} parent=11 // pred_check
          %p219 = pneg %p127
        $region26: #{tpu_custom_call.1} parent=11 // pred_check_branch
          %221 = sbr.rel (%p219) target = $region28
        $region27: #{tpu_custom_call.1} parent=11 // pred_region
          _
        $region28: #{tpu_custom_call.1} parent=11 // pred_fallthru
          _
        // Predicated region
        $region29: #{tpu_custom_call.1} parent=11 // pred_check
          %p222 = pneg %p148
        $region30: #{tpu_custom_call.1} parent=11 // pred_check_branch
          %224 = sbr.rel (%p222) target = $region32
        $region31: #{tpu_custom_call.1} parent=11 // pred_region
          %s226 = ssub.s32 1024, 1024
          %227 = vsyncadd [#allocation3], %s226
          %s228 = sshll.u32 [#allocation2], 4
          %s229 = int_to_ptr.vmem [resolvable:$true] %s228
          %234 = dma.hbm_to_vmem [thread:$0]  %s5, 1024, %s229, [#allocation3], 64, 64, 4
        $region32: #{tpu_custom_call.1} parent=11 // pred_fallthru
          _
        // Predicated region
        $region33: #{tpu_custom_call.1} parent=11 // pred_check
          %p235 = pneg %p169
        $region34: #{tpu_custom_call.1} parent=11 // pred_check_branch
          %237 = sbr.rel (%p235) target = $region36
        $region35: #{tpu_custom_call.1} parent=11 // pred_region
          _
        $region36: #{tpu_custom_call.1} parent=11 // pred_fallthru
          _
      $region12: #{tpu_custom_call.1} parent=5 // pred_fallthru
        _
      %p238 = scmp.lt.s32.totalorder %s17, 2
      // Predicated region
      $region37: #{tpu_custom_call.1} parent=5 // pred_check
        %p239 = pneg %p238
      $region38: #{tpu_custom_call.1} parent=5 // pred_check_branch
        %241 = sbr.rel (%p239) target = $region40
      $region39: #{tpu_custom_call.1} parent=5 // pred_region
        // Predicated region
        $region41: #{tpu_custom_call.1} parent=39 // pred_check
          %p242 = pneg %p37
        $region42: #{tpu_custom_call.1} parent=39 // pred_check_branch
          %244 = sbr.rel (%p242) target = $region44
        $region43: #{tpu_custom_call.1} parent=39 // pred_region
          %s245 = smul.u32 4, %s17
          %p246 = scmp.lt.s32.totalorder %s245, 7
          %s247 = scalar_select %p246, %s245, 7
          %s248 = smul.addr %s247, 8
          %s249 = scalar_lea.vmem %s0, %s248
          %s250 = smul.u32 4, %s17
        $region44: #{tpu_custom_call.1} parent=39 // pred_fallthru
          _
      $region40: #{tpu_custom_call.1} parent=5 // pred_fallthru
        _
      %p251 = scmp.le.s32.totalorder 1, %s17
      %p252 = scmp.lt.s32.totalorder %s17, 3
      %p253 = pnand %p251, %p252
      %p254 = pneg %p253
      // Predicated region
      $region45: #{tpu_custom_call.1} parent=5 // pred_check
        _
      $region46: #{tpu_custom_call.1} parent=5 // pred_check_branch
        %256 = sbr.rel (%p253) target = $region48
      $region47: #{tpu_custom_call.1} parent=5 // pred_region
        %s257 = ssub.s32 %s17, 1
        // Predicated region
        $region49: #{tpu_custom_call.1} parent=47 // pred_check
          %p258 = pneg %p148
        $region50: #{tpu_custom_call.1} parent=47 // pred_check_branch
          %260 = sbr.rel (%p258) target = $region52
        $region51: #{tpu_custom_call.1} parent=47 // pred_region
          %261 = dma.done [#allocation3], 1024
        $region52: #{tpu_custom_call.1} parent=47 // pred_fallthru
          _
        %s262 = smul.u32 4, %s22
        %p263 = scmp.lt.s32.totalorder %s262, 7
        %s264 = scalar_select %p263, %s262, 7
        %s265 = smul.addr %s264, 8
        %s266 = scalar_lea.vmem %s0, %s265
        %p267 = pneg %p43
        %p268 = pneg %p40
        %p269 = pneg %p64
        %p270 = pneg %p61
        %p271 = pneg %p85
        %p272 = pneg %p82
        %p273 = pneg %p106
        %p274 = pneg %p103
        %p275 = pneg %p127
        %p276 = pneg %p124
        %p277 = pneg %p148
        %p278 = pneg %p145
        %p279 = pneg %p169
        %p280 = pneg %p166
        %p281 = pneg %p195
        %p282 = pneg %p192
        %s283 = sand.u32 %s182, 1
        %s284 = scalar_lea.sflag [#allocation4], %s283
        %s285 = sand.u32 %s182, 1
        %s286 = smul.addr %s285, 32
        %s287 = scalar_lea.vmem [#allocation5], %s286
        %s288 = smul.u32 4, %s22
        %p289 = scmp.lt.s32.totalorder %s288, 7
        %s290 = scalar_select %p289, %s288, 7
        %s291 = smul.addr %s290, 8
        %s292 = scalar_lea.vmem %s0, %s291
        %s293 = smul.u32 4, %s22
        %s294 = smul.u32 4, %s22
        %v299 = vld [vmem:[%s292] sm:$0xff]
        %v300 = vld [vmem:[%s292 + $0x8] sm:$0xff]
        %v301 = vld [vmem:[%s292 + $0x10] sm:$0xff]
        %v302 = vld [vmem:[%s292 + $0x18] sm:$0xff]
        %v303 = vpack.c.bf16 %v300, %v299
        %v304 = vpack.c.bf16 %v302, %v301
        %v305 = vld [vmem:[%s1] sm:$0xf]
        %v306 = vld [vmem:[%s1 + $0x4] sm:$0xf]
        %v307 = vld [vmem:[%s1 + $0x8] sm:$0xf]
        %v308 = vld [vmem:[%s1 + $0xc] sm:$0xf]
        %v309 = vld [vmem:[%s2] sm:$0x1]
        %v311 = vlaneseq
        %v312 = vshrl.u32 %v311, 7
        %v313 = vsub.s32 0, %v312
        %v314 = vrot.slane %v309, %v313
        %v320 = vunpack.c.l.b16 %v305
        %v321 = vunpack.c.l.b16 %v306
        %v322 = vunpack.c.l.b16 %v307
        %v323 = vunpack.c.l.b16 %v308
        %v324 = vpack.c.b16 %v321, %v320
        %v325 = vpack.c.b16 %v323, %v322
        %vm328 = vcmask 261120
        %v330 = vsel %vm328, %v303, 0
        %v333 = vsel %vm328, %v304, 0
        %335 = vmatprep.subr.bf16.mxu0 0
        %336 = vmatpush1.bf16.msra.mxu0 %v324
        %337 = vmatprep.subr.bf16.mxu0 0
        %338 = vmatpush1.bf16.msra.mxu0 %v325
        %339 = vmatprep.subr.bf16.mxu0 0
        %340 = vmatpush1.bf16.msra.mxu0 0
        %341 = vmatprep.subr.bf16.mxu0 0
        %342 = vmatpush1.bf16.msra.mxu0 0
        %343 = vmatprep.subr.bf16.mxu0 0
        %344 = vmatpush1.bf16.msra.mxu0 0
        %345 = vmatprep.subr.bf16.mxu0 0
        %346 = vmatpush1.bf16.msra.mxu0 0
        %347 = vmatprep.subr.bf16.mxu0 0
        %348 = vmatpush1.bf16.msra.mxu0 0
        %349 = vmatprep.subr.bf16.mxu0 0
        %350 = vmatpush1.bf16.msra.mxu0 0
        %351 = vmatprep.subr.bf16.mxu0 0
        %352 = vmatpush1.bf16.msra.mxu0 0
        %353 = vmatprep.subr.bf16.mxu0 0
        %354 = vmatpush1.bf16.msra.mxu0 0
        %355 = vmatprep.subr.bf16.mxu0 0
        %356 = vmatpush1.bf16.msra.mxu0 0
        %357 = vmatprep.subr.bf16.mxu0 0
        %358 = vmatpush1.bf16.msra.mxu0 0
        %359 = vmatprep.subr.bf16.mxu0 0
        %360 = vmatpush1.bf16.msra.mxu0 0
        %361 = vmatprep.subr.bf16.mxu0 0
        %362 = vmatpush1.bf16.msra.mxu0 0
        %363 = vmatprep.subr.bf16.mxu0 0
        %364 = vmatpush1.bf16.msra.mxu0 0
        %365 = vmatprep.subr.bf16.mxu0 0
        %366 = vmatpush1.bf16.msra.mxu0 0
        %367 = vmatprep.mubr.bf16.mxu0 0
        %368 = vmatmul.mubr.bf16.gmra.mrb[0].mxu0 %v330
        %v369 = vpop.f32.mrb[0].mxu0
        %v370 = vadd.f32 %v314, %v369
        %v371 = vpop.f32.mrb[0].mxu0
        %v372 = vpop.f32.mrb[0].mxu0
        %v373 = vadd.f32 %v314, %v372
        %v374 = vpop.f32.mrb[0].mxu0
        %375 = vmatprep.mubr.bf16.mxu0 0
        %376 = vmatmul.mubr.bf16.gmra.mrb[0].mxu0 %v333
        %v377 = vpop.f32.mrb[0].mxu0
        %v378 = vadd.f32 %v314, %v377
        %v379 = vpop.f32.mrb[0].mxu0
        %v380 = vpop.f32.mrb[0].mxu0
        %v381 = vadd.f32 %v314, %v380
        %v382 = vpop.f32.mrb[0].mxu0
        %383 = vdwg.mxu0
        %v384 = vpack.c.bf16 %v373, %v370
        %v385 = vpack.c.bf16 %v381, %v378
        %vm386 = vcmp.gt.bf16.partialorder %v384, 0
        %vm387 = vcmp.gt.bf16.partialorder %v385, 0
        %v388 = vmin.bf16 %v384, 0
        %v389 = vmin.bf16 %v385, 0
        %v391 = vmul.bf16 %v388, 1069105081
        %v392 = vpow.bf16.pop %v391
        %v394 = vmul.bf16 %v389, 1069105081
        %v395 = vpow.bf16.pop %v394
        %v396 = vsub.bf16 %v392, 1065369472
        %v397 = vsub.bf16 %v395, 1065369472
        %v398 = vmul.bf16 %v396, 1071005654
        %v399 = vmul.bf16 %v397, 1071005654
        %v400 = vsel %vm386, %v384, %v398
        %v401 = vsel %vm387, %v385, %v399
        %v402 = vmul.bf16 %v400, 1065762694
        %v403 = vmul.bf16 %v401, 1065762694
        %v404 = vld [vmem:[%s3] sm:$0xf]
        %v405 = vld [vmem:[%s3 + $0x4] sm:$0xf]
        %v406 = vld [vmem:[%s3 + $0x8] sm:$0xf]
        %v407 = vld [vmem:[%s3 + $0xc] sm:$0xf]
        %v408 = vld [vmem:[%s3 + $0x10] sm:$0xf]
        %v409 = vld [vmem:[%s3 + $0x14] sm:$0xf]
        %v410 = vld [vmem:[%s3 + $0x18] sm:$0xf]
        %v411 = vld [vmem:[%s3 + $0x1c] sm:$0xf]
        %v412 = vld [vmem:[%s3 + $0x20] sm:$0xf]
        %v413 = vld [vmem:[%s3 + $0x24] sm:$0xf]
        %v414 = vld [vmem:[%s3 + $0x28] sm:$0xf]
        %v415 = vld [vmem:[%s3 + $0x2c] sm:$0xf]
        %v416 = vld [vmem:[%s3 + $0x30] sm:$0xf]
        %v417 = vld [vmem:[%s3 + $0x34] sm:$0xf]
        %v418 = vld [vmem:[%s3 + $0x38] sm:$0xf]
        %v419 = vld [vmem:[%s3 + $0x3c] sm:$0xf]
        %v420 = vld [vmem:[%s4] sm:$0x1]
        %v422 = vlaneseq
        %v423 = vshrl.u32 %v422, 7
        %v424 = vsub.s32 0, %v423
        %v425 = vrot.slane %v420, %v424
        %v443 = vunpack.c.l.b16 %v404
        %v444 = vunpack.c.l.b16 %v405
        %v445 = vunpack.c.l.b16 %v406
        %v446 = vunpack.c.l.b16 %v407
        %v447 = vunpack.c.l.b16 %v408
        %v448 = vunpack.c.l.b16 %v409
        %v449 = vunpack.c.l.b16 %v410
        %v450 = vunpack.c.l.b16 %v411
        %v451 = vunpack.c.l.b16 %v412
        %v452 = vunpack.c.l.b16 %v413
        %v453 = vunpack.c.l.b16 %v414
        %v454 = vunpack.c.l.b16 %v415
        %v455 = vunpack.c.l.b16 %v416
        %v456 = vunpack.c.l.b16 %v417
        %v457 = vunpack.c.l.b16 %v418
        %v458 = vunpack.c.l.b16 %v419
        %v459 = vpack.c.b16 %v444, %v443
        %v460 = vpack.c.b16 %v446, %v445
        %v461 = vpack.c.b16 %v448, %v447
        %v462 = vpack.c.b16 %v450, %v449
        %v463 = vpack.c.b16 %v452, %v451
        %v464 = vpack.c.b16 %v454, %v453
        %v465 = vpack.c.b16 %v456, %v455
        %v466 = vpack.c.b16 %v458, %v457
        %475 = vmatprep.subr.bf16.mxu0 0
        %476 = vmatpush1.bf16.msra.mxu0 %v459
        %477 = vmatprep.subr.bf16.mxu0 0
        %478 = vmatpush1.bf16.msra.mxu0 %v460
        %479 = vmatprep.subr.bf16.mxu0 0
        %480 = vmatpush1.bf16.msra.mxu0 %v461
        %481 = vmatprep.subr.bf16.mxu0 0
        %482 = vmatpush1.bf16.msra.mxu0 %v462
        %483 = vmatprep.subr.bf16.mxu0 0
        %484 = vmatpush1.bf16.msra.mxu0 %v463
        %485 = vmatprep.subr.bf16.mxu0 0
        %486 = vmatpush1.bf16.msra.mxu0 %v464
        %487 = vmatprep.subr.bf16.mxu0 0
        %488 = vmatpush1.bf16.msra.mxu0 %v465
        %489 = vmatprep.subr.bf16.mxu0 0
        %490 = vmatpush1.bf16.msra.mxu0 %v466
        %491 = vmatprep.subr.bf16.mxu0 0
        %492 = vmatpush1.bf16.msra.mxu0 0
        %493 = vmatprep.subr.bf16.mxu0 0
        %494 = vmatpush1.bf16.msra.mxu0 0
        %495 = vmatprep.subr.bf16.mxu0 0
        %496 = vmatpush1.bf16.msra.mxu0 0
        %497 = vmatprep.subr.bf16.mxu0 0
        %498 = vmatpush1.bf16.msra.mxu0 0
        %499 = vmatprep.subr.bf16.mxu0 0
        %500 = vmatpush1.bf16.msra.mxu0 0
        %501 = vmatprep.subr.bf16.mxu0 0
        %502 = vmatpush1.bf16.msra.mxu0 0
        %503 = vmatprep.subr.bf16.mxu0 0
        %504 = vmatpush1.bf16.msra.mxu0 0
        %505 = vmatprep.subr.bf16.mxu0 0
        %506 = vmatpush1.bf16.msra.mxu0 0
        %507 = vmatprep.mubr.bf16.mxu0 0
        %508 = vmatmul.mubr.bf16.gmra.mrb[0].mxu0 %v402
        %v509 = vpop.f32.mrb[0].mxu0
        %v510 = vadd.f32 %v425, %v509
        %v511 = vpop.f32.mrb[0].mxu0
        %v512 = vpop.f32.mrb[0].mxu0
        %v513 = vadd.f32 %v425, %v512
        %v514 = vpop.f32.mrb[0].mxu0
        %515 = vmatprep.mubr.bf16.mxu0 0
        %516 = vmatmul.mubr.bf16.gmra.mrb[0].mxu0 %v403
        %v517 = vpop.f32.mrb[0].mxu0
        %v518 = vadd.f32 %v425, %v517
        %v519 = vpop.f32.mrb[0].mxu0
        %v520 = vpop.f32.mrb[0].mxu0
        %v521 = vadd.f32 %v425, %v520
        %v522 = vpop.f32.mrb[0].mxu0
        %523 = vdwg.mxu0
        %v524 = vpack.c.bf16 %v513, %v510
        %v525 = vpack.c.bf16 %v521, %v518
        %vm526 = vcmp.gt.bf16.partialorder %v524, 0
        %vm527 = vcmp.gt.bf16.partialorder %v525, 0
        %v528 = vmin.bf16 %v524, 0
        %v529 = vmin.bf16 %v525, 0
        %v531 = vmul.bf16 %v528, 1069105081
        %v532 = vpow.bf16.pop %v531
        %v534 = vmul.bf16 %v529, 1069105081
        %v535 = vpow.bf16.pop %v534
        %v536 = vsub.bf16 %v532, 1065369472
        %v537 = vsub.bf16 %v535, 1065369472
        %v538 = vmul.bf16 %v536, 1071005654
        %v539 = vmul.bf16 %v537, 1071005654
        %v540 = vsel %vm526, %v524, %v538
        %v541 = vsel %vm527, %v525, %v539
        %v542 = vmul.bf16 %v540, 1065762694
        %v543 = vmul.bf16 %v541, 1065762694
        %v544 = vld [vmem:[#allocation2] sm:$0xf]
        %v545 = vld [vmem:[#allocation2 + $0x4] sm:$0xf]
        %v546 = vld [vmem:[#allocation2 + $0x8] sm:$0xf]
        %v547 = vld [vmem:[#allocation2 + $0xc] sm:$0xf]
        %v548 = vld [vmem:[#allocation2 + $0x10] sm:$0xf]
        %v549 = vld [vmem:[#allocation2 + $0x14] sm:$0xf]
        %v550 = vld [vmem:[#allocation2 + $0x18] sm:$0xf]
        %v551 = vld [vmem:[#allocation2 + $0x1c] sm:$0xf]
        %v552 = vld [vmem:[#allocation2 + $0x20] sm:$0xf]
        %v553 = vld [vmem:[#allocation2 + $0x24] sm:$0xf]
        %v554 = vld [vmem:[#allocation2 + $0x28] sm:$0xf]
        %v555 = vld [vmem:[#allocation2 + $0x2c] sm:$0xf]
        %v556 = vld [vmem:[#allocation2 + $0x30] sm:$0xf]
        %v557 = vld [vmem:[#allocation2 + $0x34] sm:$0xf]
        %v558 = vld [vmem:[#allocation2 + $0x38] sm:$0xf]
        %v559 = vld [vmem:[#allocation2 + $0x3c] sm:$0xf]
        %v560 = vld [vmem:[%s6] sm:$0x1]
        %v562 = vlaneseq
        %v563 = vshrl.u32 %v562, 7
        %v564 = vsub.s32 0, %v563
        %v565 = vrot.slane %v560, %v564
        %v583 = vunpack.c.l.b16 %v544
        %v584 = vunpack.c.l.b16 %v545
        %v585 = vunpack.c.l.b16 %v546
        %v586 = vunpack.c.l.b16 %v547
        %v587 = vunpack.c.l.b16 %v548
        %v588 = vunpack.c.l.b16 %v549
        %v589 = vunpack.c.l.b16 %v550
        %v590 = vunpack.c.l.b16 %v551
        %v591 = vunpack.c.l.b16 %v552
        %v592 = vunpack.c.l.b16 %v553
        %v593 = vunpack.c.l.b16 %v554
        %v594 = vunpack.c.l.b16 %v555
        %v595 = vunpack.c.l.b16 %v556
        %v596 = vunpack.c.l.b16 %v557
        %v597 = vunpack.c.l.b16 %v558
        %v598 = vunpack.c.l.b16 %v559
        %v599 = vpack.c.b16 %v584, %v583
        %v600 = vpack.c.b16 %v586, %v585
        %v601 = vpack.c.b16 %v588, %v587
        %v602 = vpack.c.b16 %v590, %v589
        %v603 = vpack.c.b16 %v592, %v591
        %v604 = vpack.c.b16 %v594, %v593
        %v605 = vpack.c.b16 %v596, %v595
        %v606 = vpack.c.b16 %v598, %v597
        %615 = vmatprep.subr.bf16.mxu0 0
        %616 = vmatpush1.bf16.msra.mxu0 %v599
        %617 = vmatprep.subr.bf16.mxu0 0
        %618 = vmatpush1.bf16.msra.mxu0 %v600
        %619 = vmatprep.subr.bf16.mxu0 0
        %620 = vmatpush1.bf16.msra.mxu0 %v601
        %621 = vmatprep.subr.bf16.mxu0 0
        %622 = vmatpush1.bf16.msra.mxu0 %v602
        %623 = vmatprep.subr.bf16.mxu0 0
        %624 = vmatpush1.bf16.msra.mxu0 %v603
        %625 = vmatprep.subr.bf16.mxu0 0
        %626 = vmatpush1.bf16.msra.mxu0 %v604
        %627 = vmatprep.subr.bf16.mxu0 0
        %628 = vmatpush1.bf16.msra.mxu0 %v605
        %629 = vmatprep.subr.bf16.mxu0 0
        %630 = vmatpush1.bf16.msra.mxu0 %v606
        %631 = vmatprep.subr.bf16.mxu0 0
        %632 = vmatpush1.bf16.msra.mxu0 0
        %633 = vmatprep.subr.bf16.mxu0 0
        %634 = vmatpush1.bf16.msra.mxu0 0
        %635 = vmatprep.subr.bf16.mxu0 0
        %636 = vmatpush1.bf16.msra.mxu0 0
        %637 = vmatprep.subr.bf16.mxu0 0
        %638 = vmatpush1.bf16.msra.mxu0 0
        %639 = vmatprep.subr.bf16.mxu0 0
        %640 = vmatpush1.bf16.msra.mxu0 0
        %641 = vmatprep.subr.bf16.mxu0 0
        %642 = vmatpush1.bf16.msra.mxu0 0
        %643 = vmatprep.subr.bf16.mxu0 0
        %644 = vmatpush1.bf16.msra.mxu0 0
        %645 = vmatprep.subr.bf16.mxu0 0
        %646 = vmatpush1.bf16.msra.mxu0 0
        %647 = vmatprep.mubr.bf16.mxu0 0
        %648 = vmatmul.mubr.bf16.gmra.mrb[0].mxu0 %v542
        %v649 = vpop.f32.mrb[0].mxu0
        %v650 = vadd.f32 %v565, %v649
        %v651 = vpop.f32.mrb[0].mxu0
        %v652 = vpop.f32.mrb[0].mxu0
        %v653 = vadd.f32 %v565, %v652
        %v654 = vpop.f32.mrb[0].mxu0
        %655 = vmatprep.mubr.bf16.mxu0 0
        %656 = vmatmul.mubr.bf16.gmra.mrb[0].mxu0 %v543
        %v657 = vpop.f32.mrb[0].mxu0
        %v658 = vadd.f32 %v565, %v657
        %v659 = vpop.f32.mrb[0].mxu0
        %v660 = vpop.f32.mrb[0].mxu0
        %v661 = vadd.f32 %v565, %v660
        %v662 = vpop.f32.mrb[0].mxu0
        %663 = vdwg.mxu0
        %v664 = vpack.c.bf16 %v653, %v650
        %v665 = vpack.c.bf16 %v661, %v658
        %v666 = vtanh.bf16.pop %v664
        %v667 = vtanh.bf16.pop %v665
        %v668 = vunpack.c.l.bf16 %v666
        %v669 = vunpack.c.h.bf16 %v666
        %v670 = vunpack.c.l.bf16 %v667
        %v671 = vunpack.c.h.bf16 %v667
        %672 = vst [vmem:[%s287] sm:$0xff] %v668
        %673 = vst [vmem:[%s287 + $0x8] sm:$0xff] %v669
        %674 = vst [vmem:[%s287 + $0x10] sm:$0xff] %v670
        %675 = vst [vmem:[%s287 + $0x18] sm:$0xff] %v671
        %s676 = sand.u32 %s182, 1
        %s677 = scalar_lea.sflag [#allocation4], %s676
        %s678 = sand.u32 %s182, 1
        %s679 = smul.addr %s678, 32
        %s680 = scalar_lea.vmem [#allocation5], %s679
        // Predicated region
        $region53: #{tpu_custom_call.1} parent=47 // pred_check
          %p681 = pneg %p192
        $region54: #{tpu_custom_call.1} parent=47 // pred_check_branch
          %683 = sbr.rel (%p681) target = $region56
        $region55: #{tpu_custom_call.1} parent=47 // pred_region
          %s684 = smul.u32 4, %s22
          %s686 = ssub.s32 512, 512
          %687 = vsyncadd %s677, %s686
          %s688 = smul.addr %s684, 128
          %s689 = scalar_lea.hbm %s7, %s688
          %s690 = sshll.u32 %s680, 4
          %s691 = int_to_ptr.vmem [resolvable:$true] %s690
          %696 = dma.vmem_to_hbm [thread:$0]  %s691, 512, %s689, %s677, 128, 128, 8
        $region56: #{tpu_custom_call.1} parent=47 // pred_fallthru
          _
      $region48: #{tpu_custom_call.1} parent=5 // pred_fallthru
        _
      %p697 = scmp.le.s32.totalorder 2, %s17
      // Predicated region
      $region57: #{tpu_custom_call.1} parent=5 // pred_check
        %p698 = pneg %p697
      $region58: #{tpu_custom_call.1} parent=5 // pred_check_branch
        %700 = sbr.rel (%p698) target = $region60
      $region59: #{tpu_custom_call.1} parent=5 // pred_region
        %s701 = ssub.s32 %s17, 2
        // Predicated region
        $region61: #{tpu_custom_call.1} parent=59 // pred_check
          %p702 = pneg %p198
        $region62: #{tpu_custom_call.1} parent=59 // pred_check_branch
          %704 = sbr.rel (%p702) target = $region64
        $region63: #{tpu_custom_call.1} parent=59 // pred_region
          %s705 = sand.u32 %s183, 1
          %s706 = scalar_lea.sflag [#allocation4], %s705
          %s707 = sand.u32 %s183, 1
          %s708 = smul.addr %s707, 32
          %s709 = scalar_lea.vmem [#allocation5], %s708
          %710 = dma.done %s706, 512
        $region64: #{tpu_custom_call.1} parent=59 // pred_fallthru
          _
      $region60: #{tpu_custom_call.1} parent=5 // pred_fallthru
        _
    $region6: #{tpu_custom_call.1} parent=1 // loop_footer
      %s21 = sadd.s32 1, %s17
    $region7: #{tpu_custom_call.1} parent=1 // loop_footer_branch
      %16 = sbr.rel target = $region3
    $region8: #{tpu_custom_call.1} parent=1 // loop_exit
      _
    %711 = vsyncpa [#allocation3], 1
    %s712 = scalar_lea.sflag [#allocation3], 1
    %713 = vsyncpa %s712, 1
    %714 = vsyncpa [#allocation4], 1
    %s715 = scalar_lea.sflag [#allocation4], 1
    %716 = vsyncpa %s715, 1

</llo_original>
